<compile_context>
chip_gen: v5e
topology: v5e:2x2
jax: 0.10.0
libtpu: 0.0.40
codegen_flags: <defaults>
</compile_context>

<pallas_src>
import functools
import math

import jax
import jax.numpy as jnp
from jax import lax
from jax.experimental import pallas as pl
from jax.experimental.pallas import tpu as pltpu

_LANES = 128
_SUBLANES = 8
_MIN_ROWS_FOR_SPLIT = 2048   # ~1 MiB/input (f32): worth splitting across 2 TCs (v7x)


def _cdiv(a, b):
    return -(-a // b)


def _round_up(a, m):
    return _cdiv(a, m) * m


def _chunk_loss_sum(x_raw, z_raw):
    """Stable BCE-with-logits on one (chunk_rows, 128) slab, reduced to (8, 128)."""
    x = x_raw.astype(jnp.float32)
    z = z_raw.astype(jnp.float32) * jnp.float32(0.9) + jnp.float32(0.05)
    # PyTorch-stable form: max(x, 0) - x*z + log(1 + exp(-|x|)).
    # (plain log(1+t), t in [0,1], is used for a guaranteed Mosaic lowering;
    #  the log1p/log difference is < 1e-7 per element.)
    loss = jnp.maximum(x, 0.0) - x * z + jnp.log(1.0 + jnp.exp(-jnp.abs(x)))
    rows = loss.shape[0]
    return jnp.sum(loss.reshape(rows // _SUBLANES, _SUBLANES, _LANES), axis=0)


def _smooth_bce_kernel(logits_ref, labels_ref, out_ref, *, chunk_rows,
                       num_chunks, unroll):
    if num_chunks == 1:
        out_ref[...] = _chunk_loss_sum(logits_ref[...], labels_ref[...])
        return

    def body(c, acc):
        r0 = pl.multiple_of(c * chunk_rows, chunk_rows)
        return acc + _chunk_loss_sum(logits_ref[pl.ds(r0, chunk_rows), :],
                                     labels_ref[pl.ds(r0, chunk_rows), :])

    out_ref[...] = lax.fori_loop(
        0, num_chunks, body,
        jnp.zeros((_SUBLANES, _LANES), jnp.float32),
        unroll=unroll)


def smooth_bce_with_logits_loss(logits, labels, *, tile_rows=4096):
    """Pallas equivalent of SmoothBCEWithLogitsLoss()(logits, labels)."""
    assert logits.shape == labels.shape, (logits.shape, labels.shape)
    n_total = int(logits.size)
    assert n_total > 0

    # Sublane multiple required by the narrower input dtype
    # (8 for 4-byte, 16 for 2-byte, 32 for 1-byte elements).
    mult = max(_SUBLANES,
               32 // jnp.dtype(logits.dtype).itemsize,
               32 // jnp.dtype(labels.dtype).itemsize)

    rows = _cdiv(n_total, _LANES)

    # ---------------- tile selection ----------------
    cap = max(mult, min(_round_up(tile_rows, mult), _round_up(rows, mult)))
    base_tiles = _cdiv(rows, cap)
    if rows >= _MIN_ROWS_FOR_SPLIT:
        base_tiles = max(base_tiles, 2)          # keep both v7x TensorCores busy

    # Prefer a tiling with zero padding (avoids a full jnp.pad copy of both
    # inputs) whenever the flat size is already lane-aligned.
    num_tiles = None
    tr = None
    if n_total % _LANES == 0:
        for n in range(base_tiles, base_tiles + 8):
            t = _round_up(_cdiv(rows, n), mult)
            if n * t == rows:
                num_tiles, tr = n, t
                break
    if num_tiles is None:
        tr = _round_up(_cdiv(rows, base_tiles), mult)
        num_tiles = _cdiv(rows, tr)
    tile_rows = tr

    padded_rows = num_tiles * tile_rows
    pad = padded_rows * _LANES - n_total

    # ---------------- layout (reshape is a free bitcast when pad == 0) -------
    flat_logits = logits.reshape(-1)
    flat_labels = labels.reshape(-1)
    if pad:
        # Padded elements are EXACT zeros (jnp.pad default).  For x=0, z=0.05
        # the stable BCE term is exactly log(2); the epilogue subtracts
        # pad*log(2), so no per-element masking is needed inside the kernel.
        flat_logits = jnp.pad(flat_logits, (0, pad))
        flat_labels = jnp.pad(flat_labels, (0, pad))
    x2 = flat_logits.reshape(padded_rows, _LANES)
    z2 = flat_labels.reshape(padded_rows, _LANES)

    # Chunk size for the in-kernel reduction loop (always divides tile_rows).
    chunk_rows = next(c for c in (128, 64, 32, 16, 8)
                      if c >= mult and tile_rows % c == 0)
    num_chunks = tile_rows // chunk_rows

    n_padded = padded_rows * _LANES
    cost = pl.CostEstimate(
        flops=8 * n_padded,
        transcendentals=2 * n_padded,
        bytes_accessed=n_padded * (jnp.dtype(logits.dtype).itemsize
                                   + jnp.dtype(labels.dtype).itemsize)
        + num_tiles * _SUBLANES * _LANES * 4,
    )

    partials = pl.pallas_call(
        functools.partial(_smooth_bce_kernel,
                          chunk_rows=chunk_rows,
                          num_chunks=num_chunks,
                          unroll=num_chunks <= 16),
        out_shape=jax.ShapeDtypeStruct((num_tiles * _SUBLANES, _LANES),
                                       jnp.float32),
        grid_spec=pltpu.PrefetchScalarGridSpec(
            num_scalar_prefetch=0,
            grid=(num_tiles,),
            in_specs=[
                pl.BlockSpec((tile_rows, _LANES), lambda i: (i, 0)),
                pl.BlockSpec((tile_rows, _LANES), lambda i: (i, 0)),
            ],
            out_specs=pl.BlockSpec((_SUBLANES, _LANES), lambda i: (i, 0)),
        ),
        compiler_params=pltpu.CompilerParams(
            dimension_semantics=("parallel",),
        ),
        cost_estimate=cost,
    )(x2, z2)

    # Tiny epilogue in plain JAX: cross-lane/sublane reduce, pad correction, mean.
    total = jnp.sum(partials, dtype=jnp.float32)
    if pad:
        total = total - jnp.float32(pad) * jnp.float32(math.log(2.0))
    return total / jnp.float32(n_total)


def _reference(logits, labels):
    x = logits.astype(jnp.float32)
    z = labels.astype(jnp.float32) * 0.9 + 0.05
    loss = jnp.maximum(x, 0.0) - x * z + jnp.log1p(jnp.exp(-jnp.abs(x)))
    return jnp.mean(loss)


if __name__ == "__main__":
    key = jax.random.PRNGKey(0)
    k1, k2, k3, k4, k5, k6 = jax.random.split(key, 6)

    # 1) Small ragged multi-label head (C not a multiple of 128):
    #    exercises the pad + epilogue-log(2)-correction path.
    N, C = 16, 30
    logits = jax.random.normal(k1, (N, C), dtype=jnp.float32) * 3.0
    labels = (jax.random.uniform(k2, (N, C)) > 0.5).astype(jnp.float32)
    loss = smooth_bce_with_logits_loss(logits, labels)
    jax.block_until_ready(loss)
    ref = _reference(logits, labels)
    assert jnp.allclose(loss, ref, rtol=1e-5, atol=1e-5), (loss, ref)

    # 2) Lane-aligned shape: zero-padding / zero-copy path.
    N2, C2 = 16, 128
    logits2 = jax.random.normal(k3, (N2, C2), dtype=jnp.float32) * 3.0
    labels2 = (jax.random.uniform(k4, (N2, C2)) > 0.5).astype(jnp.float32)
    loss2 = smooth_bce_with_logits_loss(logits2, labels2)
    jax.block_until_ready(loss2)
    ref2 = _reference(logits2, labels2)
    assert jnp.allclose(loss2, ref2, rtol=1e-5, atol=1e-5), (loss2, ref2)

    # 3) Native bf16 inputs: exercises the 16-row sublane-multiple path.
    N3, C3 = 24, 100
    logits3 = (jax.random.normal(k5, (N3, C3)) * 3.0).astype(jnp.bfloat16)
    labels3 = (jax.random.uniform(k6, (N3, C3)) > 0.5).astype(jnp.bfloat16)
    loss3 = smooth_bce_with_logits_loss(logits3, labels3)
    jax.block_until_ready(loss3)
    ref3 = _reference(logits3, labels3)
    assert jnp.allclose(loss3, ref3, rtol=1e-4, atol=1e-4), (loss3, ref3)

    print("KERNEL_OK")
</pallas_src>

<mosaic_0001>
module attributes {stable_mosaic.version = 11 : i64} {
  func.func @_smooth_bce_kernel(%arg0: i32, %arg1: memref<8x128xf32, #tpu.memory_space<vmem>>, %arg2: memref<8x128xf32, #tpu.memory_space<vmem>>, %arg3: memref<8x128xf32, #tpu.memory_space<vmem>>) attributes {dimension_semantics = [#tpu.dimension_semantics<parallel>], iteration_bounds = array<i64: 1>, scalar_prefetch = 0 : i64, scratch_operands = 0 : i64, tpu.core_type = #tpu.core_type<tc>, window_params = [{transform_indices = @transform_0, window_bounds = array<i64: 8, 128>}, {transform_indices = @transform_1, window_bounds = array<i64: 8, 128>}, {transform_indices = @transform_2, window_bounds = array<i64: 8, 128>}]} {
    %c0 = arith.constant 0 : index
    %c0_0 = arith.constant 0 : index
    %0 = vector.load %arg1[%c0, %c0_0] : memref<8x128xf32, #tpu.memory_space<vmem>>, vector<8x128xf32>
    %c0_1 = arith.constant 0 : index
    %c0_2 = arith.constant 0 : index
    %1 = vector.load %arg2[%c0_1, %c0_2] : memref<8x128xf32, #tpu.memory_space<vmem>>, vector<8x128xf32>
    %cst = arith.constant 0.899999976 : f32
    %2 = vector.broadcast %cst : f32 to vector<8x128xf32>
    %3 = arith.mulf %1, %2 : vector<8x128xf32>
    %cst_3 = arith.constant 5.000000e-02 : f32
    %4 = vector.broadcast %cst_3 : f32 to vector<8x128xf32>
    %5 = arith.addf %3, %4 : vector<8x128xf32>
    %cst_4 = arith.constant 0.000000e+00 : f32
    %6 = vector.broadcast %cst_4 : f32 to vector<8x128xf32>
    %7 = arith.maximumf %0, %6 : vector<8x128xf32>
    %8 = arith.mulf %0, %5 : vector<8x128xf32>
    %9 = arith.subf %7, %8 : vector<8x128xf32>
    %10 = math.absf %0 : vector<8x128xf32>
    %cst_5 = arith.constant 0.000000e+00 : f32
    %11 = vector.broadcast %cst_5 : f32 to vector<8x128xf32>
    %12 = arith.subf %11, %10 : vector<8x128xf32>
    %13 = math.exp %12 : vector<8x128xf32>
    %cst_6 = arith.constant 1.000000e+00 : f32
    %14 = vector.broadcast %cst_6 : f32 to vector<8x128xf32>
    %15 = arith.addf %14, %13 : vector<8x128xf32>
    %16 = math.log %15 : vector<8x128xf32>
    %17 = arith.addf %9, %16 : vector<8x128xf32>
    %18 = vector.shape_cast %17 : vector<8x128xf32> to vector<1x8x128xf32>
    %cst_7 = arith.constant dense<0.000000e+00> : vector<8x128xf32>
    %19 = vector.multi_reduction <add>, %18, %cst_7 [0] : vector<1x8x128xf32> to vector<8x128xf32>
    %c0_8 = arith.constant 0 : index
    %c0_9 = arith.constant 0 : index
    %20 = vector.load %arg3[%c0_8, %c0_9] : memref<8x128xf32, #tpu.memory_space<vmem>>, vector<8x128xf32>
    tpu.vector_store %arg3[%c0_8, %c0_9], %19 {strides = array<i32>} : memref<8x128xf32, #tpu.memory_space<vmem>>, vector<8x128xf32>,
    return
  }
  func.func @transform_0(%arg0: i32) -> (i32, i32) {
    %c0_i32 = arith.constant 0 : i32
    %c0_i32_0 = arith.constant 0 : i32
    return %arg0, %c0_i32 : i32, i32
  }
  func.func @transform_1(%arg0: i32) -> (i32, i32) {
    %c0_i32 = arith.constant 0 : i32
    %c0_i32_0 = arith.constant 0 : i32
    return %arg0, %c0_i32 : i32, i32
  }
  func.func @transform_2(%arg0: i32) -> (i32, i32) {
    %c0_i32 = arith.constant 0 : i32
    %c0_i32_0 = arith.constant 0 : i32
    return %arg0, %c0_i32 : i32, i32
  }
}

</mosaic_0001>

<llo_original>
// kernel: tpu_custom_call.1
$region0: #{tpu_custom_call.1}
  #allocation0 [shape = 'u32[]', space=smem, size = 0x4, offset = 0x4, fixed_abs, tag = 'smem constant byte address 0x4 - core index']
  #allocation1 [shape = 'u32[72,128]{1,0:T(1,128)}', space=vmem, size = 0x9000, scoped, tag = 'internal scratch']
  %s0 = inlined_call_operand.hbm [shape: f32[8,128], index: 0, kind: input, shape index: {}]
  %s1 = inlined_call_operand.hbm [shape: f32[8,128], index: 1, kind: input, shape index: {}]
  %s2 = inlined_call_operand.hbm [shape: f32[8,128], index: 2, kind: output, shape index: {}]
  %s3 = sld [smem:[#allocation0]]
  $region26: #{tpu_custom_call.1} parent=0
    _
  %s5 = ssub.s32 1, %s3
  %s6 = scalar_select 0, %s5, %s3
  $region1: #{tpu_custom_call.1} parent=0
    #allocation2 [shape = 'u8[4096]{0}', space=vmem, size = 0x1000, scoped, tag = 'input window, operand 0, single buffered']
    #allocation3 [shape = 's32[1]{0}', space=sflag, size = 0x4, scoped, tag = 'scoped memory for tpu_custom_call.1']
    #allocation4 [shape = 's32[1]{0}', space=sflag, size = 0x4, scoped, tag = 'scoped memory for tpu_custom_call.1']
    #allocation5 [shape = 'u8[4096]{0}', space=vmem, size = 0x1000, scoped, tag = 'input window, operand 1, single buffered']
    #allocation6 [shape = 's32[1]{0}', space=sflag, size = 0x4, scoped, tag = 'scoped memory for tpu_custom_call.1']
    #allocation7 [shape = 'u8[4096]{0}', space=vmem, size = 0x1000, scoped, tag = 'output window, operand 0, single buffered']
    %7 = vsyncpa [#allocation3], 0
    %8 = vsyncpa [#allocation6], 0
    %9 = vsyncpa [#allocation4], 0
    // Predicated region
    $region2: #{tpu_custom_call.1} parent=1 // pred_check
      _
    $region3: #{tpu_custom_call.1} parent=1 // pred_check_branch
      %11 = sbr.rel (0) target = $region5
    $region4: #{tpu_custom_call.1} parent=1 // pred_region
      %13 = vsyncadd [#allocation3], 0
      %s15 = sshll.u32 %s0, 4
      %s16 = int_to_ptr.hbm [resolvable:$true] %s15
      %s17 = sshll.u32 [#allocation2], 4
      %s18 = int_to_ptr.vmem [resolvable:$true] %s17
      %20 = dma.hbm_to_vmem [thread:$0]  %s16, 128, %s18, [#allocation3]
    $region5: #{tpu_custom_call.1} parent=1 // pred_fallthru
      _
    // Predicated region
    $region6: #{tpu_custom_call.1} parent=1 // pred_check
      _
    $region7: #{tpu_custom_call.1} parent=1 // pred_check_branch
      %22 = sbr.rel (0) target = $region9
    $region8: #{tpu_custom_call.1} parent=1 // pred_region
      %24 = vsyncadd [#allocation6], 0
      %s26 = sshll.u32 %s1, 4
      %s27 = int_to_ptr.hbm [resolvable:$true] %s26
      %s28 = sshll.u32 [#allocation5], 4
      %s29 = int_to_ptr.vmem [resolvable:$true] %s28
      %31 = dma.hbm_to_vmem [thread:$0]  %s27, 128, %s29, [#allocation6]
    $region9: #{tpu_custom_call.1} parent=1 // pred_fallthru
      _
    // Predicated region
    $region10: #{tpu_custom_call.1} parent=1 // pred_check
      _
    $region11: #{tpu_custom_call.1} parent=1 // pred_check_branch
      %33 = sbr.rel (0) target = $region13
    $region12: #{tpu_custom_call.1} parent=1 // pred_region
      %35 = dma.done [#allocation3], 128
    $region13: #{tpu_custom_call.1} parent=1 // pred_fallthru
      _
    // Predicated region
    $region14: #{tpu_custom_call.1} parent=1 // pred_check
      _
    $region15: #{tpu_custom_call.1} parent=1 // pred_check_branch
      %37 = sbr.rel (0) target = $region17
    $region16: #{tpu_custom_call.1} parent=1 // pred_region
      %39 = dma.done [#allocation6], 128
    $region17: #{tpu_custom_call.1} parent=1 // pred_fallthru
      _
    %v40 = vld [vmem:[#allocation2] sm:$0xff]
    %v41 = vld [vmem:[#allocation5] sm:$0xff]
    %v42 = vmul.f32 %v41, 0.9
    %v43 = vadd.f32 %v42, 0.05
    %v44 = vmax.f32 %v40, 0.0
    %v45 = vmul.f32 %v40, %v43
    %v46 = vsub.f32 %v44, %v45
    %v47 = vand.u32 2147483647, %v40
    %v48 = vsub.f32 0.0, %v47
    %v49 = vmul.f32 %v48, 1.442695
    %v50 = vpow.pop %v49
    %v51 = vadd.f32 %v50, 1.0
    %v52 = vlog2.pop %v51
    %v53 = vmul.f32 %v52, 0.6931472
    %v54 = vadd.f32 %v46, %v53
    %v55 = vadd.f32 %v54, 0.0
    %56 = vst [vmem:[#allocation7] sm:$0xff] %v55
    // Predicated region
    $region18: #{tpu_custom_call.1} parent=1 // pred_check
      _
    $region19: #{tpu_custom_call.1} parent=1 // pred_check_branch
      %58 = sbr.rel (0) target = $region21
    $region20: #{tpu_custom_call.1} parent=1 // pred_region
      %60 = vsyncadd [#allocation4], 0
      %s62 = sshll.u32 [#allocation7], 4
      %s63 = int_to_ptr.vmem [resolvable:$true] %s62
      %s64 = sshll.u32 %s2, 4
      %s65 = int_to_ptr.hbm [resolvable:$true] %s64
      %67 = dma.vmem_to_hbm [thread:$0]  %s63, 128, %s65, [#allocation4]
    $region21: #{tpu_custom_call.1} parent=1 // pred_fallthru
      _
    // Predicated region
    $region22: #{tpu_custom_call.1} parent=1 // pred_check
      _
    $region23: #{tpu_custom_call.1} parent=1 // pred_check_branch
      %69 = sbr.rel (0) target = $region25
    $region24: #{tpu_custom_call.1} parent=1 // pred_region
      %71 = dma.done [#allocation4], 128
    $region25: #{tpu_custom_call.1} parent=1 // pred_fallthru
      _
    %72 = vsyncpa [#allocation3], 1
    %73 = vsyncpa [#allocation6], 1
    %74 = vsyncpa [#allocation4], 1

</llo_original>
